<compile_context>
chip_gen: v7x
topology: tpu7x:2x2x1
jax: 0.10.0
libtpu: 0.0.40
codegen_flags: <defaults>
</compile_context>

<pallas_src>
import functools

import jax
import jax.numpy as jnp
from jax.experimental import pallas as pl
from jax.experimental.pallas import tpu as pltpu


# ---------------------------------------------------------------------------
# Kernel 1: LayerNorm + Q/K/V projections (Q pre-scaled by 1/sqrt(head_size)).
# ---------------------------------------------------------------------------
def _ln_qkv_kernel(x_ref, lnw_ref, lnb_ref,
                   wq_ref, bq_ref, wk_ref, bk_ref, wv_ref, bv_ref,
                   q_ref, k_ref, v_ref, *, compute_dtype):
    x = x_ref[0].astype(jnp.float32)                                  # (Br, C)
    mu = jnp.mean(x, axis=-1, keepdims=True)
    var = jnp.mean((x - mu) * (x - mu), axis=-1, keepdims=True)
    h = ((x - mu) * jax.lax.rsqrt(var + 1e-5) * lnw_ref[0]
         + lnb_ref[0]).astype(compute_dtype)                          # (Br, C)
    # Three lane-dense (Br, C) stores, each written straight from its matmul
    # (no (Br, 3C) temporary, no materialized slices).
    q_ref[0] = (jnp.dot(h, wq_ref[...], preferred_element_type=jnp.float32)
                + bq_ref[0]).astype(q_ref.dtype)
    k_ref[0] = (jnp.dot(h, wk_ref[...], preferred_element_type=jnp.float32)
                + bk_ref[0]).astype(k_ref.dtype)
    v_ref[0] = (jnp.dot(h, wv_ref[...], preferred_element_type=jnp.float32)
                + bv_ref[0]).astype(v_ref.dtype)


# ---------------------------------------------------------------------------
# Kernel 2: flash-style attention (online softmax over key tiles) + proj_out.
# ---------------------------------------------------------------------------
def _attn_kernel(q_ref, k_ref, v_ref, wo_ref, bo_ref, o_ref,
                 m_sc, l_sc, acc_sc,
                 *, n_heads, head_size, seq_len, block_k, padded,
                 compute_dtype, approx_recip, exp_in_compute_dtype):
    ki = pl.program_id(2)
    nk = pl.num_programs(2)

    @pl.when(ki == 0)
    def _():
        m_sc[...] = jnp.full_like(m_sc, -jnp.inf)
        l_sc[...] = jnp.zeros_like(l_sc)
        acc_sc[...] = jnp.zeros_like(acc_sc)

    q = q_ref[0]                       # (Bq, C)  compute_dtype, pre-scaled
    k = k_ref[0]                       # (Bk, C)  compute_dtype
    v = v_ref[0]                       # (Bk, C)  compute_dtype

    if padded:
        key_idx = ki * block_k + jax.lax.broadcasted_iota(
            jnp.int32, (1, block_k), 1)
        key_valid = key_idx < seq_len                                  # (1, Bk)

    for h in range(n_heads):
        lo = h * head_size
        hi = lo + head_size
        s = jnp.einsum('qd,kd->qk', q[:, lo:hi], k[:, lo:hi],
                       preferred_element_type=jnp.float32)             # (Bq, Bk)
        if padded:
            s = jnp.where(key_valid, s, -jnp.inf)

        m_prev = m_sc[h]                                               # (Bq, 1)
        m_new = jnp.maximum(m_prev, jnp.max(s, axis=-1, keepdims=True))
        alpha = jnp.exp(m_prev - m_new)                                # (Bq, 1)
        if exp_in_compute_dtype:
            p = jnp.exp((s - m_new).astype(compute_dtype))             # bf16 EUP
        else:
            p = jnp.exp(s - m_new)
        l_sc[h] = alpha * l_sc[h] + jnp.sum(p, axis=-1, keepdims=True,
                                            dtype=jnp.float32)
        acc_sc[:, lo:hi] = alpha * acc_sc[:, lo:hi] + jnp.dot(
            p.astype(compute_dtype), v[:, lo:hi],
            preferred_element_type=jnp.float32)
        m_sc[h] = m_new

    @pl.when(ki == nk - 1)
    def _():
        # Deferred softmax normalization: scale the (Bq, D) accumulator per
        # head (L/D fewer multiplies than scaling the (Bq, L) probabilities).
        for h in range(n_heads):
            lo = h * head_size
            hi = lo + head_size
            acc_sc[:, lo:hi] = acc_sc[:, lo:hi] * pl.reciprocal(
                l_sc[h], approx=approx_recip)
        y = jnp.dot(acc_sc[...].astype(compute_dtype), wo_ref[...],
                    preferred_element_type=jnp.float32) + bo_ref[0]
        o_ref[0] = y.astype(o_ref.dtype)                               # (Bq, C)


# ---------------------------------------------------------------------------
# Wrapper.
# ---------------------------------------------------------------------------
def _round_up(x, m):
    return (x + m - 1) // m * m


def _choose_block(L):
    # MXU-friendly block sizes; pad L rather than shrinking below 128.
    if L >= 256:
        return 256
    if L >= 128:
        return 128
    return _round_up(L, 8)


def _vmem_limit(working_set_bytes):
    # Generous scoped-VMEM budget: 2x estimated working set, >= 32 MiB, and
    # capped below v7x's 64 MiB physical VMEM.
    return int(min(64 * 1024 * 1024, max(32 * 1024 * 1024, 2 * working_set_bytes)))


def attn_block(x, params, n_heads, *, compute_dtype=jnp.bfloat16,
               block=None, exp_in_compute_dtype=None):
    B, L, C = x.shape
    assert C % n_heads == 0
    head_size = C // n_heads
    scale = float(head_size) ** (-0.5)
    if exp_in_compute_dtype is None:
        # bf16 exp uses the bf16-native EUP (v6e/v7x).  Set False on v5e.
        exp_in_compute_dtype = compute_dtype != jnp.float32

    (lnw, lnb, wq, bq, wk, bk, wv, bv, wo, bo) = params

    # Wrapper-side parameter prep: pre-transpose, fold the softmax scale into
    # Q, cast matmul weights to the compute dtype (biases / LN params f32).
    wq_t = (wq.T * scale).astype(compute_dtype)
    bq2 = (bq * scale).reshape(1, C).astype(jnp.float32)
    wk_t = wk.T.astype(compute_dtype)
    bk2 = bk.reshape(1, C).astype(jnp.float32)
    wv_t = wv.T.astype(compute_dtype)
    bv2 = bv.reshape(1, C).astype(jnp.float32)
    wo_t = wo.T.astype(compute_dtype)
    bo2 = bo.reshape(1, C).astype(jnp.float32)
    lnw2 = lnw.reshape(1, C).astype(jnp.float32)
    lnb2 = lnb.reshape(1, C).astype(jnp.float32)

    if block is None:
        block = _choose_block(L)
    L_pad = _round_up(L, block)
    padded = L_pad != L
    x_in = jnp.pad(x, ((0, 0), (0, L_pad - L), (0, 0))) if padded else x
    num_t = L_pad // block

    const_spec = pl.BlockSpec(memory_space=pltpu.MemorySpace.VMEM)
    cd_size = jnp.dtype(compute_dtype).itemsize
    x_size = jnp.dtype(x.dtype).itemsize

    # ----------------- Kernel 1: LayerNorm + Q/K/V projection ----------------
    qkv_est = (2 * block * C * (x_size + 3 * cd_size)      # in + 3 outs, 2x buffered
               + 3 * C * C * cd_size + 8 * C * 4           # weights + biases
               + 6 * block * C * 4)                        # f32 temporaries
    q, k, v = pl.pallas_call(
        functools.partial(_ln_qkv_kernel, compute_dtype=compute_dtype),
        out_shape=(jax.ShapeDtypeStruct((B, L_pad, C), compute_dtype),
                   jax.ShapeDtypeStruct((B, L_pad, C), compute_dtype),
                   jax.ShapeDtypeStruct((B, L_pad, C), compute_dtype)),
        grid_spec=pltpu.PrefetchScalarGridSpec(
            num_scalar_prefetch=0,
            grid=(B, num_t),
            in_specs=[
                pl.BlockSpec((1, block, C), lambda b, i: (b, i, 0)),   # x tile
                const_spec, const_spec,        # LayerNorm weight, bias
                const_spec, const_spec,        # Q weight (pre-scaled), bias
                const_spec, const_spec,        # K weight, bias
                const_spec, const_spec,        # V weight, bias
            ],
            out_specs=[pl.BlockSpec((1, block, C), lambda b, i: (b, i, 0)),
                       pl.BlockSpec((1, block, C), lambda b, i: (b, i, 0)),
                       pl.BlockSpec((1, block, C), lambda b, i: (b, i, 0))],
        ),
        compiler_params=pltpu.CompilerParams(
            dimension_semantics=("parallel", "parallel"),
            vmem_limit_bytes=_vmem_limit(qkv_est)),
        cost_estimate=pl.CostEstimate(
            flops=int(6 * B * L_pad * C * C),
            transcendentals=int(B * L_pad),
            bytes_accessed=int(B * L_pad * C * (x_size + 3 * cd_size)
                               + 3 * C * C * cd_size + 8 * C * 4)),
    )(x_in, lnw2, lnb2, wq_t, bq2, wk_t, bk2, wv_t, bv2)

    # -------- Kernel 2: flash attention over key tiles + output proj --------
    attn_est = (2 * block * C * cd_size            # q tile, double-buffered
                + 4 * block * C * cd_size          # k, v tiles, double-buffered
                + 2 * block * C * x_size           # out tile, double-buffered
                + C * C * cd_size + C * 4          # proj weight + bias
                + block * C * 4                    # f32 accumulator scratch
                + 2 * n_heads * block * 128 * 4    # m/l scratch (lane-padded)
                + 6 * block * block * 4)           # f32 temporaries (s, p, ...)
    out = pl.pallas_call(
        functools.partial(
            _attn_kernel, n_heads=n_heads, head_size=head_size, seq_len=L,
            block_k=block, padded=padded, compute_dtype=compute_dtype,
            approx_recip=(compute_dtype != jnp.float32),
            exp_in_compute_dtype=exp_in_compute_dtype),
        out_shape=jax.ShapeDtypeStruct((B, L_pad, C), x.dtype),
        grid_spec=pltpu.PrefetchScalarGridSpec(
            num_scalar_prefetch=0,
            grid=(B, num_t, num_t),
            in_specs=[
                pl.BlockSpec((1, block, C), lambda b, qi, ki: (b, qi, 0)),  # Q
                pl.BlockSpec((1, block, C), lambda b, qi, ki: (b, ki, 0)),  # K
                pl.BlockSpec((1, block, C), lambda b, qi, ki: (b, ki, 0)),  # V
                const_spec, const_spec,                                     # Wo, bo
            ],
            out_specs=pl.BlockSpec((1, block, C), lambda b, qi, ki: (b, qi, 0)),
            scratch_shapes=[
                pltpu.VMEM((n_heads, block, 1), jnp.float32),   # running max
                pltpu.VMEM((n_heads, block, 1), jnp.float32),   # running sum
                pltpu.VMEM((block, C), jnp.float32),            # PV accumulator
            ],
        ),
        compiler_params=pltpu.CompilerParams(
            dimension_semantics=("parallel", "parallel", "arbitrary"),
            vmem_limit_bytes=_vmem_limit(attn_est)),
        cost_estimate=pl.CostEstimate(
            flops=int(4 * B * L_pad * L_pad * C + 2 * B * L_pad * C * C),
            transcendentals=int(B * n_heads * L_pad * L_pad),
            bytes_accessed=int(B * L_pad * C * cd_size * (1 + 2 * num_t)
                               + B * L_pad * C * x_size + C * C * cd_size)),
    )(q, k, v, wo_t, bo2)

    return out[:, :L, :] if padded else out


# ---------------------------------------------------------------------------
# Pure-JAX reference mirroring the PyTorch forward (eval mode, mask=None).
# ---------------------------------------------------------------------------
def _reference(x, params, n_heads):
    (lnw, lnb, wq, bq, wk, bk, wv, bv, wo, bo) = params
    B, L, C = x.shape
    D = C // n_heads
    mu = jnp.mean(x, axis=-1, keepdims=True)
    var = jnp.mean((x - mu) ** 2, axis=-1, keepdims=True)
    h = (x - mu) / jnp.sqrt(var + 1e-5) * lnw + lnb
    q = (h @ wq.T + bq).reshape(B, L, n_heads, D).transpose(0, 2, 1, 3)
    k = (h @ wk.T + bk).reshape(B, L, n_heads, D).transpose(0, 2, 1, 3)
    v = (h @ wv.T + bv).reshape(B, L, n_heads, D).transpose(0, 2, 1, 3)
    w_ = jnp.einsum("bhqd,bhkd->bhqk", q, k) * (D ** -0.5)
    w_ = jax.nn.softmax(w_, axis=-1)
    o = jnp.einsum("bhqk,bhkd->bhqd", w_, v).transpose(0, 2, 1, 3).reshape(B, L, C)
    return o @ wo.T + bo


def _make_params(key, C):
    ks = jax.random.split(key, 10)
    lnw = 1.0 + 0.1 * jax.random.normal(ks[0], (C,), jnp.float32)
    lnb = 0.1 * jax.random.normal(ks[1], (C,), jnp.float32)
    wq = 0.05 * jax.random.normal(ks[2], (C, C), jnp.float32)
    bq = 0.05 * jax.random.normal(ks[3], (C,), jnp.float32)
    wk = 0.05 * jax.random.normal(ks[4], (C, C), jnp.float32)
    bk = 0.05 * jax.random.normal(ks[5], (C,), jnp.float32)
    wv = 0.05 * jax.random.normal(ks[6], (C, C), jnp.float32)
    bv = 0.05 * jax.random.normal(ks[7], (C,), jnp.float32)
    wo = 0.05 * jax.random.normal(ks[8], (C, C), jnp.float32)
    bo = 0.05 * jax.random.normal(ks[9], (C,), jnp.float32)
    return (lnw, lnb, wq, bq, wk, bk, wv, bv, wo, bo)


if __name__ == "__main__":
    key = jax.random.PRNGKey(0)
    k_small, k_med, kx1, kx2 = jax.random.split(key, 4)

    # --- Small shape (single tile, no padding): tight f32 + loose bf16 check.
    B, L, C, n_heads = 2, 8, 32, 2
    params = _make_params(k_small, C)
    x = jax.random.normal(kx1, (B, L, C), jnp.float32)
    ref = _reference(x, params, n_heads)

    out_f32 = jax.block_until_ready(
        attn_block(x, params, n_heads, compute_dtype=jnp.float32))
    assert out_f32.shape == (B, L, C)
    assert jnp.allclose(out_f32, ref, atol=1e-4, rtol=1e-4), "small f32 mismatch"

    out_bf16 = jax.block_until_ready(
        attn_block(x, params, n_heads, compute_dtype=jnp.bfloat16))
    assert out_bf16.shape == (B, L, C)
    assert jnp.allclose(out_bf16, ref, atol=2e-2, rtol=2e-2), "small bf16 mismatch"

    # --- Medium shape (multi-tile grid, padding + key masking, D=64 heads).
    B2, L2, C2, n_heads2 = 2, 160, 256, 4          # pads to L=256, 2x2 kv grid
    params2 = _make_params(k_med, C2)
    x2 = jax.random.normal(kx2, (B2, L2, C2), jnp.float32)
    ref2 = _reference(x2, params2, n_heads2)

    out2_f32 = jax.block_until_ready(
        attn_block(x2, params2, n_heads2, compute_dtype=jnp.float32))
    assert out2_f32.shape == (B2, L2, C2)
    assert jnp.allclose(out2_f32, ref2, atol=1e-3, rtol=1e-3), "medium f32 mismatch"

    out2_bf16 = jax.block_until_ready(
        attn_block(x2, params2, n_heads2, compute_dtype=jnp.bfloat16))
    assert out2_bf16.shape == (B2, L2, C2)
    assert jnp.allclose(out2_bf16, ref2, atol=5e-2, rtol=5e-2), "medium bf16 mismatch"

    print("KERNEL_OK")
</pallas_src>

<mosaic_0001>
module attributes {stable_mosaic.version = 11 : i64} {
  func.func @_ln_qkv_kernel(%arg0: i32, %arg1: i32, %arg2: memref<1x8x32xf32, #tpu.memory_space<vmem>>, %arg3: memref<1x32xf32, #tpu.memory_space<vmem>>, %arg4: memref<1x32xf32, #tpu.memory_space<vmem>>, %arg5: memref<32x32xf32, #tpu.memory_space<vmem>>, %arg6: memref<1x32xf32, #tpu.memory_space<vmem>>, %arg7: memref<32x32xf32, #tpu.memory_space<vmem>>, %arg8: memref<1x32xf32, #tpu.memory_space<vmem>>, %arg9: memref<32x32xf32, #tpu.memory_space<vmem>>, %arg10: memref<1x32xf32, #tpu.memory_space<vmem>>, %arg11: memref<1x8x32xf32, #tpu.memory_space<vmem>>, %arg12: memref<1x8x32xf32, #tpu.memory_space<vmem>>, %arg13: memref<1x8x32xf32, #tpu.memory_space<vmem>>) attributes {dimension_semantics = [#tpu.dimension_semantics<parallel>, #tpu.dimension_semantics<parallel>], iteration_bounds = array<i64: 2, 1>, scalar_prefetch = 0 : i64, scratch_operands = 0 : i64, tpu.core_type = #tpu.core_type<tc>, window_params = [{transform_indices = @transform_0, window_bounds = array<i64: 1, 8, 32>}, {pipeline_mode = #tpu.pipeline_mode<synchronous>, transform_indices = @transform_1, window_bounds = array<i64: 1, 32>}, {pipeline_mode = #tpu.pipeline_mode<synchronous>, transform_indices = @transform_2, window_bounds = array<i64: 1, 32>}, {pipeline_mode = #tpu.pipeline_mode<synchronous>, transform_indices = @transform_3, window_bounds = array<i64: 32, 32>}, {pipeline_mode = #tpu.pipeline_mode<synchronous>, transform_indices = @transform_4, window_bounds = array<i64: 1, 32>}, {pipeline_mode = #tpu.pipeline_mode<synchronous>, transform_indices = @transform_5, window_bounds = array<i64: 32, 32>}, {pipeline_mode = #tpu.pipeline_mode<synchronous>, transform_indices = @transform_6, window_bounds = array<i64: 1, 32>}, {pipeline_mode = #tpu.pipeline_mode<synchronous>, transform_indices = @transform_7, window_bounds = array<i64: 32, 32>}, {pipeline_mode = #tpu.pipeline_mode<synchronous>, transform_indices = @transform_8, window_bounds = array<i64: 1, 32>}, {transform_indices = @transform_9, window_bounds = array<i64: 1, 8, 32>}, {transform_indices = @transform_10, window_bounds = array<i64: 1, 8, 32>}, {transform_indices = @transform_11, window_bounds = array<i64: 1, 8, 32>}]} {
    %c0 = arith.constant 0 : index
    %c0_0 = arith.constant 0 : index
    %c0_1 = arith.constant 0 : index
    %0 = vector.load %arg2[%c0, %c0_0, %c0_1] : memref<1x8x32xf32, #tpu.memory_space<vmem>>, vector<1x8x32xf32>
    %1 = vector.shape_cast %0 : vector<1x8x32xf32> to vector<8x32xf32>
    %cst = arith.constant dense<0.000000e+00> : vector<8xf32>
    %2 = vector.multi_reduction <add>, %1, %cst [1] : vector<8x32xf32> to vector<8xf32>
    %3 = vector.shape_cast %2 : vector<8xf32> to vector<8x1xf32>
    %cst_2 = arith.constant 3.200000e+01 : f32
    %4 = vector.broadcast %cst_2 : f32 to vector<8x1xf32>
    %5 = arith.divf %3, %4 : vector<8x1xf32>
    %6 = vector.broadcast %5 : vector<8x1xf32> to vector<8x32xf32>
    %7 = arith.subf %1, %6 : vector<8x32xf32>
    %8 = vector.broadcast %5 : vector<8x1xf32> to vector<8x32xf32>
    %9 = arith.subf %1, %8 : vector<8x32xf32>
    %10 = arith.mulf %7, %9 : vector<8x32xf32>
    %cst_3 = arith.constant dense<0.000000e+00> : vector<8xf32>
    %11 = vector.multi_reduction <add>, %10, %cst_3 [1] : vector<8x32xf32> to vector<8xf32>
    %12 = vector.shape_cast %11 : vector<8xf32> to vector<8x1xf32>
    %cst_4 = arith.constant 3.200000e+01 : f32
    %13 = vector.broadcast %cst_4 : f32 to vector<8x1xf32>
    %14 = arith.divf %12, %13 : vector<8x1xf32>
    %15 = vector.broadcast %5 : vector<8x1xf32> to vector<8x32xf32>
    %16 = arith.subf %1, %15 : vector<8x32xf32>
    %cst_5 = arith.constant 9.99999974E-6 : f32
    %17 = vector.broadcast %cst_5 : f32 to vector<8x1xf32>
    %18 = arith.addf %14, %17 : vector<8x1xf32>
    %19 = math.rsqrt %18 : vector<8x1xf32>
    %20 = vector.broadcast %19 : vector<8x1xf32> to vector<8x32xf32>
    %21 = arith.mulf %16, %20 : vector<8x32xf32>
    %c0_6 = arith.constant 0 : index
    %c0_7 = arith.constant 0 : index
    %22 = vector.load %arg3[%c0_6, %c0_7] : memref<1x32xf32, #tpu.memory_space<vmem>>, vector<1x32xf32>
    %23 = vector.shape_cast %22 : vector<1x32xf32> to vector<32xf32>
    %24 = vector.shape_cast %23 : vector<32xf32> to vector<1x32xf32>
    %25 = vector.broadcast %24 : vector<1x32xf32> to vector<8x32xf32>
    %26 = arith.mulf %21, %25 : vector<8x32xf32>
    %c0_8 = arith.constant 0 : index
    %c0_9 = arith.constant 0 : index
    %27 = vector.load %arg4[%c0_8, %c0_9] : memref<1x32xf32, #tpu.memory_space<vmem>>, vector<1x32xf32>
    %28 = vector.shape_cast %27 : vector<1x32xf32> to vector<32xf32>
    %29 = vector.shape_cast %28 : vector<32xf32> to vector<1x32xf32>
    %30 = vector.broadcast %29 : vector<1x32xf32> to vector<8x32xf32>
    %31 = arith.addf %26, %30 : vector<8x32xf32>
    %c0_10 = arith.constant 0 : index
    %c0_11 = arith.constant 0 : index
    %32 = vector.load %arg5[%c0_10, %c0_11] : memref<32x32xf32, #tpu.memory_space<vmem>>, vector<32x32xf32>
    %cst_12 = arith.constant dense<0.000000e+00> : vector<8x32xf32>
    %33 = tpu.matmul %31, %32, %cst_12 {dimension_numbers = #tpu.dot_dimension_numbers<[1], [0], [0], [1], [0, 0, 1, 1], [], []>} : vector<8x32xf32>, vector<32x32xf32>, vector<8x32xf32> -> vector<8x32xf32>
    %c0_13 = arith.constant 0 : index
    %c0_14 = arith.constant 0 : index
    %34 = vector.load %arg6[%c0_13, %c0_14] : memref<1x32xf32, #tpu.memory_space<vmem>>, vector<1x32xf32>
    %35 = vector.shape_cast %34 : vector<1x32xf32> to vector<32xf32>
    %36 = vector.shape_cast %35 : vector<32xf32> to vector<1x32xf32>
    %37 = vector.broadcast %36 : vector<1x32xf32> to vector<8x32xf32>
    %38 = arith.addf %33, %37 : vector<8x32xf32>
    %c0_15 = arith.constant 0 : index
    %c0_16 = arith.constant 0 : index
    %c0_17 = arith.constant 0 : index
    %39 = vector.load %arg11[%c0_15, %c0_16, %c0_17] : memref<1x8x32xf32, #tpu.memory_space<vmem>>, vector<1x8x32xf32>
    %40 = vector.shape_cast %39 : vector<1x8x32xf32> to vector<8x32xf32>
    %41 = vector.shape_cast %38 : vector<8x32xf32> to vector<1x8x32xf32>
    tpu.vector_store %arg11[%c0_15, %c0_16, %c0_17], %41 {strides = array<i32>} : memref<1x8x32xf32, #tpu.memory_space<vmem>>, vector<1x8x32xf32>,
    %c0_18 = arith.constant 0 : index
    %c0_19 = arith.constant 0 : index
    %42 = vector.load %arg7[%c0_18, %c0_19] : memref<32x32xf32, #tpu.memory_space<vmem>>, vector<32x32xf32>
    %cst_20 = arith.constant dense<0.000000e+00> : vector<8x32xf32>
    %43 = tpu.matmul %31, %42, %cst_20 {dimension_numbers = #tpu.dot_dimension_numbers<[1], [0], [0], [1], [0, 0, 1, 1], [], []>} : vector<8x32xf32>, vector<32x32xf32>, vector<8x32xf32> -> vector<8x32xf32>
    %c0_21 = arith.constant 0 : index
    %c0_22 = arith.constant 0 : index
    %44 = vector.load %arg8[%c0_21, %c0_22] : memref<1x32xf32, #tpu.memory_space<vmem>>, vector<1x32xf32>
    %45 = vector.shape_cast %44 : vector<1x32xf32> to vector<32xf32>
    %46 = vector.shape_cast %45 : vector<32xf32> to vector<1x32xf32>
    %47 = vector.broadcast %46 : vector<1x32xf32> to vector<8x32xf32>
    %48 = arith.addf %43, %47 : vector<8x32xf32>
    %c0_23 = arith.constant 0 : index
    %c0_24 = arith.constant 0 : index
    %c0_25 = arith.constant 0 : index
    %49 = vector.load %arg12[%c0_23, %c0_24, %c0_25] : memref<1x8x32xf32, #tpu.memory_space<vmem>>, vector<1x8x32xf32>
    %50 = vector.shape_cast %49 : vector<1x8x32xf32> to vector<8x32xf32>
    %51 = vector.shape_cast %48 : vector<8x32xf32> to vector<1x8x32xf32>
    tpu.vector_store %arg12[%c0_23, %c0_24, %c0_25], %51 {strides = array<i32>} : memref<1x8x32xf32, #tpu.memory_space<vmem>>, vector<1x8x32xf32>,
    %c0_26 = arith.constant 0 : index
    %c0_27 = arith.constant 0 : index
    %52 = vector.load %arg9[%c0_26, %c0_27] : memref<32x32xf32, #tpu.memory_space<vmem>>, vector<32x32xf32>
    %cst_28 = arith.constant dense<0.000000e+00> : vector<8x32xf32>
    %53 = tpu.matmul %31, %52, %cst_28 {dimension_numbers = #tpu.dot_dimension_numbers<[1], [0], [0], [1], [0, 0, 1, 1], [], []>} : vector<8x32xf32>, vector<32x32xf32>, vector<8x32xf32> -> vector<8x32xf32>
    %c0_29 = arith.constant 0 : index
    %c0_30 = arith.constant 0 : index
    %54 = vector.load %arg10[%c0_29, %c0_30] : memref<1x32xf32, #tpu.memory_space<vmem>>, vector<1x32xf32>
    %55 = vector.shape_cast %54 : vector<1x32xf32> to vector<32xf32>
    %56 = vector.shape_cast %55 : vector<32xf32> to vector<1x32xf32>
    %57 = vector.broadcast %56 : vector<1x32xf32> to vector<8x32xf32>
    %58 = arith.addf %53, %57 : vector<8x32xf32>
    %c0_31 = arith.constant 0 : index
    %c0_32 = arith.constant 0 : index
    %c0_33 = arith.constant 0 : index
    %59 = vector.load %arg13[%c0_31, %c0_32, %c0_33] : memref<1x8x32xf32, #tpu.memory_space<vmem>>, vector<1x8x32xf32>
    %60 = vector.shape_cast %59 : vector<1x8x32xf32> to vector<8x32xf32>
    %61 = vector.shape_cast %58 : vector<8x32xf32> to vector<1x8x32xf32>
    tpu.vector_store %arg13[%c0_31, %c0_32, %c0_33], %61 {strides = array<i32>} : memref<1x8x32xf32, #tpu.memory_space<vmem>>, vector<1x8x32xf32>,
    return
  }
  func.func @transform_0(%arg0: i32, %arg1: i32) -> (i32, i32, i32) {
    %c0_i32 = arith.constant 0 : i32
    %c0_i32_0 = arith.constant 0 : i32
    return %arg0, %arg1, %c0_i32 : i32, i32, i32
  }
  func.func @transform_1(%arg0: i32, %arg1: i32) -> (i32, i32) {
    %c0_i32 = arith.constant 0 : i32
    %c0_i32_0 = arith.constant 0 : i32
    %c0_i32_1 = arith.constant 0 : i32
    return %c0_i32, %c0_i32_0 : i32, i32
  }
  func.func @transform_2(%arg0: i32, %arg1: i32) -> (i32, i32) {
    %c0_i32 = arith.constant 0 : i32
    %c0_i32_0 = arith.constant 0 : i32
    %c0_i32_1 = arith.constant 0 : i32
    return %c0_i32, %c0_i32_0 : i32, i32
  }
  func.func @transform_3(%arg0: i32, %arg1: i32) -> (i32, i32) {
    %c0_i32 = arith.constant 0 : i32
    %c0_i32_0 = arith.constant 0 : i32
    %c0_i32_1 = arith.constant 0 : i32
    return %c0_i32, %c0_i32_0 : i32, i32
  }
  func.func @transform_4(%arg0: i32, %arg1: i32) -> (i32, i32) {
    %c0_i32 = arith.constant 0 : i32
    %c0_i32_0 = arith.constant 0 : i32
    %c0_i32_1 = arith.constant 0 : i32
    return %c0_i32, %c0_i32_0 : i32, i32
  }
  func.func @transform_5(%arg0: i32, %arg1: i32) -> (i32, i32) {
    %c0_i32 = arith.constant 0 : i32
    %c0_i32_0 = arith.constant 0 : i32
    %c0_i32_1 = arith.constant 0 : i32
    return %c0_i32, %c0_i32_0 : i32, i32
  }
  func.func @transform_6(%arg0: i32, %arg1: i32) -> (i32, i32) {
    %c0_i32 = arith.constant 0 : i32
    %c0_i32_0 = arith.constant 0 : i32
    %c0_i32_1 = arith.constant 0 : i32
    return %c0_i32, %c0_i32_0 : i32, i32
  }
  func.func @transform_7(%arg0: i32, %arg1: i32) -> (i32, i32) {
    %c0_i32 = arith.constant 0 : i32
    %c0_i32_0 = arith.constant 0 : i32
    %c0_i32_1 = arith.constant 0 : i32
    return %c0_i32, %c0_i32_0 : i32, i32
  }
  func.func @transform_8(%arg0: i32, %arg1: i32) -> (i32, i32) {
    %c0_i32 = arith.constant 0 : i32
    %c0_i32_0 = arith.constant 0 : i32
    %c0_i32_1 = arith.constant 0 : i32
    return %c0_i32, %c0_i32_0 : i32, i32
  }
  func.func @transform_9(%arg0: i32, %arg1: i32) -> (i32, i32, i32) {
    %c0_i32 = arith.constant 0 : i32
    %c0_i32_0 = arith.constant 0 : i32
    return %arg0, %arg1, %c0_i32 : i32, i32, i32
  }
  func.func @transform_10(%arg0: i32, %arg1: i32) -> (i32, i32, i32) {
    %c0_i32 = arith.constant 0 : i32
    %c0_i32_0 = arith.constant 0 : i32
    return %arg0, %arg1, %c0_i32 : i32, i32, i32
  }
  func.func @transform_11(%arg0: i32, %arg1: i32) -> (i32, i32, i32) {
    %c0_i32 = arith.constant 0 : i32
    %c0_i32_0 = arith.constant 0 : i32
    return %arg0, %arg1, %c0_i32 : i32, i32, i32
  }
}

</mosaic_0001>

<llo_original>
// kernel: tpu_custom_call.1
$region0: #{tpu_custom_call.1}
  #allocation0 [shape = 'u32[]', space=smem, size = 0x4, offset = 0x4, fixed_abs, tag = 'smem constant byte address 0x4 - core index']
  #allocation1 [shape = 'u32[144,128]{1,0:T(1,128)}', space=vmem, size = 0x12000, scoped, tag = 'internal scratch']
  %s0 = inlined_call_operand.hbm [shape: f32[2,8,32], index: 0, kind: input, shape index: {}]
  %s1 = inlined_call_operand.vmem [shape: f32[1,32], index: 1, kind: input, shape index: {}]
  %s2 = inlined_call_operand.vmem [shape: f32[1,32], index: 2, kind: input, shape index: {}]
  %s3 = inlined_call_operand.hbm [shape: f32[32,32], index: 3, kind: input, shape index: {}]
  %s4 = inlined_call_operand.vmem [shape: f32[1,32], index: 4, kind: input, shape index: {}]
  %s5 = inlined_call_operand.hbm [shape: f32[32,32], index: 5, kind: input, shape index: {}]
  %s6 = inlined_call_operand.vmem [shape: f32[1,32], index: 6, kind: input, shape index: {}]
  %s7 = inlined_call_operand.hbm [shape: f32[32,32], index: 7, kind: input, shape index: {}]
  %s8 = inlined_call_operand.vmem [shape: f32[1,32], index: 8, kind: input, shape index: {}]
  %s9 = inlined_call_operand.hbm [shape: f32[2,8,32], index: 9, kind: output, shape index: {0}]
  %s10 = inlined_call_operand.hbm [shape: f32[2,8,32], index: 10, kind: output, shape index: {1}]
  %s11 = inlined_call_operand.hbm [shape: f32[2,8,32], index: 11, kind: output, shape index: {2}]
  %12 = xla_tuple %s9, %s10, %s11
  %s13 = sld [smem:[#allocation0]]
  $region101: #{tpu_custom_call.1} parent=0
    _
  %s15 = ssub.s32 1, %s13
  %s16 = scalar_select 0, %s15, %s13
  $region1: #{tpu_custom_call.1} parent=0
    #allocation2 [shape = 'u8[8192]{0}', space=vmem, size = 0x2000, scoped, tag = 'input window, operand 0']
    #allocation3 [shape = 's32[2]{0}', space=sflag, size = 0x8, scoped, tag = 'scoped memory for tpu_custom_call.1']
    #allocation4 [shape = 's32[2]{0}', space=sflag, size = 0x8, scoped, tag = 'scoped memory for tpu_custom_call.1']
    #allocation5 [shape = 'u8[16384]{0}', space=vmem, size = 0x4000, scoped, tag = 'input window, operand 3, single buffered']
    #allocation6 [shape = 's32[1]{0}', space=sflag, size = 0x4, scoped, tag = 'scoped memory for tpu_custom_call.1']
    #allocation7 [shape = 'u8[16384]{0}', space=vmem, size = 0x4000, scoped, tag = 'input window, operand 5, single buffered']
    #allocation8 [shape = 'u8[16384]{0}', space=vmem, size = 0x4000, scoped, tag = 'input window, operand 7, single buffered']
    #allocation9 [shape = 's32[1]{0}', space=sflag, size = 0x4, scoped, tag = 'scoped memory for tpu_custom_call.1']
    #allocation10 [shape = 'u8[8192]{0}', space=vmem, size = 0x2000, scoped, tag = 'output window, operand 0']
    #allocation11 [shape = 'u8[8192]{0}', space=vmem, size = 0x2000, scoped, tag = 'output window, operand 1']
    #allocation12 [shape = 's32[2]{0}', space=sflag, size = 0x8, scoped, tag = 'scoped memory for tpu_custom_call.1']
    #allocation13 [shape = 'u8[8192]{0}', space=vmem, size = 0x2000, scoped, tag = 'output window, operand 2']
    %17 = vsyncpa [#allocation3], 0
    %s18 = scalar_lea.sflag [#allocation3], 1
    %19 = vsyncpa %s18, 0
    %20 = vsyncpa [#allocation6], 0
    %21 = vsyncpa [#allocation9], 0
    %22 = vsyncpa [#allocation4], 0
    %s23 = scalar_lea.sflag [#allocation4], 1
    %24 = vsyncpa %s23, 0
    %25 = vsyncpa [#allocation12], 0
    %s26 = scalar_lea.sflag [#allocation12], 1
    %27 = vsyncpa %s26, 0
    loop: start=0, step=1, limit=4
    $region2: #{tpu_custom_call.1} parent=1 // loop_pre_header
      _
    $region3: #{tpu_custom_call.1} parent=1 // loop_header
      %s29 = sphi 0, %s33
      %p30 = scmp.ge.s32.totalorder %s29, 4
      %s36 = sphi 0, %s48
      %s37 = sphi 0, %s44
      %s38 = sphi 0, %s36
      %s39 = sphi 0, %s37
      %s40 = sphi 0, %s38
      %s41 = sphi 0, %s39
      %s53 = sphi 0, %s55
      %s56 = sphi 0, %s53
      %s57 = sphi 0, %s56
      %s73 = sphi 0, %s57
      %s77 = sphi 0, %s77
      %s79 = sphi 0, %s77
      %s80 = sphi 0, %s79
      %s94 = sphi 0, %s80
      %s98 = sphi 0, %s98
      %s100 = sphi 0, %s98
      %s101 = sphi 0, %s100
      %s115 = sphi 0, %s101
      %s119 = sphi 0, %s119
      %s121 = sphi 0, %s119
      %s122 = sphi 0, %s121
      %s136 = sphi 0, %s122
      %s140 = sphi 0, %s140
      %s142 = sphi 0, %s140
      %s143 = sphi 0, %s142
      %s157 = sphi 0, %s143
      %s161 = sphi 0, %s161
      %s163 = sphi 0, %s161
      %s164 = sphi 0, %s163
      %s178 = sphi 0, %s164
      %s182 = sphi 0, %s182
      %s184 = sphi 0, %s182
      %s185 = sphi 0, %s184
      %s199 = sphi 0, %s185
      %s203 = sphi 0, %s203
      %s205 = sphi 0, %s203
      %s206 = sphi 0, %s205
      %s220 = sphi 0, %s206
      %s224 = sphi 0, %s224
      %s226 = sphi 0, %s224
      %s227 = sphi 0, %s226
      %s241 = sphi 0, %s227
      %s249 = sphi 0, %s251
      %s252 = sphi 0, %s249
      %s253 = sphi 0, %s252
      %s269 = sphi 0, %s253
      %s277 = sphi 0, %s279
      %s280 = sphi 0, %s277
      %s281 = sphi 0, %s280
      %s297 = sphi 0, %s281
      %s305 = sphi 0, %s307
      %s308 = sphi 0, %s305
      %s309 = sphi 0, %s308
      %s325 = sphi 0, %s309
    $region4: #{tpu_custom_call.1} parent=1 // loop_header_branch
      %32 = sbr.rel (%p30) target = $region8
    $region5: #{tpu_custom_call.1} parent=1 // loop_body
      %s34 = ssub.s32 %s29, 1
      %s35 = ssub.s32 %s29, 2
      %s42 = sadd.s32 1, %s37
      %p43 = scmp.ge.s32.totalorder %s42, 1
      %s44 = scalar_select %p43, 0, %s42
      %s45 = sadd.s32 1, %s36
      %s46 = scalar_select %p43, %s45, %s36
      %p47 = scmp.ge.s32.totalorder %s46, 2
      %s48 = scalar_select %p47, 0, %s46
      %s49 = ssub.s32 %s36, %s48
      %s50 = ssub.s32 %s37, %s44
      %s51 = sor.u32 %s49, %s50
      %p52 = scmp.eq.s32.totalorder %s51, 0
      %s54 = sadd.s32 %s53, 1
      %s55 = scalar_select %p52, %s53, %s54
      %p58 = pneg %p52
      %p59 = scmp.eq.s32.totalorder %s29, 1
      %p60 = por %p58, %p59
      %p61 = scmp.ne.s32.totalorder %s53, %s56
      %p62 = scmp.eq.s32.totalorder %s29, 0
      %p63 = por %p61, %p62
      %p64 = scmp.ne.s32.totalorder %s53, %s56
      %p65 = scmp.eq.s32.totalorder %s34, 1
      %p66 = por %p64, %p65
      %p67 = scmp.ne.s32.totalorder %s56, %s57
      %p68 = scmp.eq.s32.totalorder %s34, 0
      %p69 = por %p67, %p68
      %p70 = scmp.ne.s32.totalorder %s56, %s57
      %p71 = scmp.eq.s32.totalorder %s35, 1
      %p72 = por %p70, %p71
      %p74 = scmp.ne.s32.totalorder %s57, %s73
      %p75 = scmp.eq.s32.totalorder %s35, 0
      %p76 = por %p74, %p75
      %s78 = sadd.s32 %s77, 1
      %p81 = scmp.eq.s32.totalorder %s29, 1
      %p82 = scmp.ne.s32.totalorder %s77, %s79
      %p83 = scmp.eq.s32.totalorder %s29, 0
      %p84 = por %p82, %p83
      %p85 = scmp.ne.s32.totalorder %s77, %s79
      %p86 = scmp.eq.s32.totalorder %s34, 1
      %p87 = por %p85, %p86
      %p88 = scmp.ne.s32.totalorder %s79, %s80
      %p89 = scmp.eq.s32.totalorder %s34, 0
      %p90 = por %p88, %p89
      %p91 = scmp.ne.s32.totalorder %s79, %s80
      %p92 = scmp.eq.s32.totalorder %s35, 1
      %p93 = por %p91, %p92
      %p95 = scmp.ne.s32.totalorder %s80, %s94
      %p96 = scmp.eq.s32.totalorder %s35, 0
      %p97 = por %p95, %p96
      %s99 = sadd.s32 %s98, 1
      %p102 = scmp.eq.s32.totalorder %s29, 1
      %p103 = scmp.ne.s32.totalorder %s98, %s100
      %p104 = scmp.eq.s32.totalorder %s29, 0
      %p105 = por %p103, %p104
      %p106 = scmp.ne.s32.totalorder %s98, %s100
      %p107 = scmp.eq.s32.totalorder %s34, 1
      %p108 = por %p106, %p107
      %p109 = scmp.ne.s32.totalorder %s100, %s101
      %p110 = scmp.eq.s32.totalorder %s34, 0
      %p111 = por %p109, %p110
      %p112 = scmp.ne.s32.totalorder %s100, %s101
      %p113 = scmp.eq.s32.totalorder %s35, 1
      %p114 = por %p112, %p113
      %p116 = scmp.ne.s32.totalorder %s101, %s115
      %p117 = scmp.eq.s32.totalorder %s35, 0
      %p118 = por %p116, %p117
      %s120 = sadd.s32 %s119, 1
      %p123 = scmp.eq.s32.totalorder %s29, 1
      %p124 = scmp.ne.s32.totalorder %s119, %s121
      %p125 = scmp.eq.s32.totalorder %s29, 0
      %p126 = por %p124, %p125
      %p127 = scmp.ne.s32.totalorder %s119, %s121
      %p128 = scmp.eq.s32.totalorder %s34, 1
      %p129 = por %p127, %p128
      %p130 = scmp.ne.s32.totalorder %s121, %s122
      %p131 = scmp.eq.s32.totalorder %s34, 0
      %p132 = por %p130, %p131
      %p133 = scmp.ne.s32.totalorder %s121, %s122
      %p134 = scmp.eq.s32.totalorder %s35, 1
      %p135 = por %p133, %p134
      %p137 = scmp.ne.s32.totalorder %s122, %s136
      %p138 = scmp.eq.s32.totalorder %s35, 0
      %p139 = por %p137, %p138
      %s141 = sadd.s32 %s140, 1
      %p144 = scmp.eq.s32.totalorder %s29, 1
      %p145 = scmp.ne.s32.totalorder %s140, %s142
      %p146 = scmp.eq.s32.totalorder %s29, 0
      %p147 = por %p145, %p146
      %p148 = scmp.ne.s32.totalorder %s140, %s142
      %p149 = scmp.eq.s32.totalorder %s34, 1
      %p150 = por %p148, %p149
      %p151 = scmp.ne.s32.totalorder %s142, %s143
      %p152 = scmp.eq.s32.totalorder %s34, 0
      %p153 = por %p151, %p152
      %p154 = scmp.ne.s32.totalorder %s142, %s143
      %p155 = scmp.eq.s32.totalorder %s35, 1
      %p156 = por %p154, %p155
      %p158 = scmp.ne.s32.totalorder %s143, %s157
      %p159 = scmp.eq.s32.totalorder %s35, 0
      %p160 = por %p158, %p159
      %s162 = sadd.s32 %s161, 1
      %p165 = scmp.eq.s32.totalorder %s29, 1
      %p166 = scmp.ne.s32.totalorder %s161, %s163
      %p167 = scmp.eq.s32.totalorder %s29, 0
      %p168 = por %p166, %p167
      %p169 = scmp.ne.s32.totalorder %s161, %s163
      %p170 = scmp.eq.s32.totalorder %s34, 1
      %p171 = por %p169, %p170
      %p172 = scmp.ne.s32.totalorder %s163, %s164
      %p173 = scmp.eq.s32.totalorder %s34, 0
      %p174 = por %p172, %p173
      %p175 = scmp.ne.s32.totalorder %s163, %s164
      %p176 = scmp.eq.s32.totalorder %s35, 1
      %p177 = por %p175, %p176
      %p179 = scmp.ne.s32.totalorder %s164, %s178
      %p180 = scmp.eq.s32.totalorder %s35, 0
      %p181 = por %p179, %p180
      %s183 = sadd.s32 %s182, 1
      %p186 = scmp.eq.s32.totalorder %s29, 1
      %p187 = scmp.ne.s32.totalorder %s182, %s184
      %p188 = scmp.eq.s32.totalorder %s29, 0
      %p189 = por %p187, %p188
      %p190 = scmp.ne.s32.totalorder %s182, %s184
      %p191 = scmp.eq.s32.totalorder %s34, 1
      %p192 = por %p190, %p191
      %p193 = scmp.ne.s32.totalorder %s184, %s185
      %p194 = scmp.eq.s32.totalorder %s34, 0
      %p195 = por %p193, %p194
      %p196 = scmp.ne.s32.totalorder %s184, %s185
      %p197 = scmp.eq.s32.totalorder %s35, 1
      %p198 = por %p196, %p197
      %p200 = scmp.ne.s32.totalorder %s185, %s199
      %p201 = scmp.eq.s32.totalorder %s35, 0
      %p202 = por %p200, %p201
      %s204 = sadd.s32 %s203, 1
      %p207 = scmp.eq.s32.totalorder %s29, 1
      %p208 = scmp.ne.s32.totalorder %s203, %s205
      %p209 = scmp.eq.s32.totalorder %s29, 0
      %p210 = por %p208, %p209
      %p211 = scmp.ne.s32.totalorder %s203, %s205
      %p212 = scmp.eq.s32.totalorder %s34, 1
      %p213 = por %p211, %p212
      %p214 = scmp.ne.s32.totalorder %s205, %s206
      %p215 = scmp.eq.s32.totalorder %s34, 0
      %p216 = por %p214, %p215
      %p217 = scmp.ne.s32.totalorder %s205, %s206
      %p218 = scmp.eq.s32.totalorder %s35, 1
      %p219 = por %p217, %p218
      %p221 = scmp.ne.s32.totalorder %s206, %s220
      %p222 = scmp.eq.s32.totalorder %s35, 0
      %p223 = por %p221, %p222
      %s225 = sadd.s32 %s224, 1
      %p228 = scmp.eq.s32.totalorder %s29, 1
      %p229 = scmp.ne.s32.totalorder %s224, %s226
      %p230 = scmp.eq.s32.totalorder %s29, 0
      %p231 = por %p229, %p230
      %p232 = scmp.ne.s32.totalorder %s224, %s226
      %p233 = scmp.eq.s32.totalorder %s34, 1
      %p234 = por %p232, %p233
      %p235 = scmp.ne.s32.totalorder %s226, %s227
      %p236 = scmp.eq.s32.totalorder %s34, 0
      %p237 = por %p235, %p236
      %p238 = scmp.ne.s32.totalorder %s226, %s227
      %p239 = scmp.eq.s32.totalorder %s35, 1
      %p240 = por %p238, %p239
      %p242 = scmp.ne.s32.totalorder %s227, %s241
      %p243 = scmp.eq.s32.totalorder %s35, 0
      %p244 = por %p242, %p243
      %s245 = ssub.s32 %s36, %s48
      %s246 = ssub.s32 %s37, %s44
      %s247 = sor.u32 %s245, %s246
      %p248 = scmp.eq.s32.totalorder %s247, 0
      %s250 = sadd.s32 %s249, 1
      %s251 = scalar_select %p248, %s249, %s250
      %p254 = pneg %p248
      %p255 = scmp.eq.s32.totalorder %s29, 1
      %p256 = por %p254, %p255
      %p257 = scmp.ne.s32.totalorder %s249, %s252
      %p258 = scmp.eq.s32.totalorder %s29, 0
      %p259 = por %p257, %p258
      %p260 = scmp.ne.s32.totalorder %s249, %s252
      %p261 = scmp.eq.s32.totalorder %s34, 1
      %p262 = por %p260, %p261
      %p263 = scmp.ne.s32.totalorder %s252, %s253
      %p264 = scmp.eq.s32.totalorder %s34, 0
      %p265 = por %p263, %p264
      %p266 = scmp.ne.s32.totalorder %s252, %s253
      %p267 = scmp.eq.s32.totalorder %s35, 1
      %p268 = por %p266, %p267
      %p270 = scmp.ne.s32.totalorder %s253, %s269
      %p271 = scmp.eq.s32.totalorder %s35, 0
      %p272 = por %p270, %p271
      %s273 = ssub.s32 %s36, %s48
      %s274 = ssub.s32 %s37, %s44
      %s275 = sor.u32 %s273, %s274
      %p276 = scmp.eq.s32.totalorder %s275, 0
      %s278 = sadd.s32 %s277, 1
      %s279 = scalar_select %p276, %s277, %s278
      %p282 = pneg %p276
      %p283 = scmp.eq.s32.totalorder %s29, 1
      %p284 = por %p282, %p283
      %p285 = scmp.ne.s32.totalorder %s277, %s280
      %p286 = scmp.eq.s32.totalorder %s29, 0
      %p287 = por %p285, %p286
      %p288 = scmp.ne.s32.totalorder %s277, %s280
      %p289 = scmp.eq.s32.totalorder %s34, 1
      %p290 = por %p288, %p289
      %p291 = scmp.ne.s32.totalorder %s280, %s281
      %p292 = scmp.eq.s32.totalorder %s34, 0
      %p293 = por %p291, %p292
      %p294 = scmp.ne.s32.totalorder %s280, %s281
      %p295 = scmp.eq.s32.totalorder %s35, 1
      %p296 = por %p294, %p295
      %p298 = scmp.ne.s32.totalorder %s281, %s297
      %p299 = scmp.eq.s32.totalorder %s35, 0
      %p300 = por %p298, %p299
      %s301 = ssub.s32 %s36, %s48
      %s302 = ssub.s32 %s37, %s44
      %s303 = sor.u32 %s301, %s302
      %p304 = scmp.eq.s32.totalorder %s303, 0
      %s306 = sadd.s32 %s305, 1
      %s307 = scalar_select %p304, %s305, %s306
      %p310 = pneg %p304
      %p311 = scmp.eq.s32.totalorder %s29, 1
      %p312 = por %p310, %p311
      %p313 = scmp.ne.s32.totalorder %s305, %s308
      %p314 = scmp.eq.s32.totalorder %s29, 0
      %p315 = por %p313, %p314
      %p316 = scmp.ne.s32.totalorder %s305, %s308
      %p317 = scmp.eq.s32.totalorder %s34, 1
      %p318 = por %p316, %p317
      %p319 = scmp.ne.s32.totalorder %s308, %s309
      %p320 = scmp.eq.s32.totalorder %s34, 0
      %p321 = por %p319, %p320
      %p322 = scmp.ne.s32.totalorder %s308, %s309
      %p323 = scmp.eq.s32.totalorder %s35, 1
      %p324 = por %p322, %p323
      %p326 = scmp.ne.s32.totalorder %s309, %s325
      %p327 = scmp.eq.s32.totalorder %s35, 0
      %p328 = por %p326, %p327
      %p329 = scmp.le.s32.totalorder 1, %s29
      %p330 = scmp.lt.s32.totalorder %s29, 3
      %p331 = pnand %p329, %p330
      %p332 = pneg %p331
      // Predicated region
      $region9: #{tpu_custom_call.1} parent=5 // pred_check
        _
      $region10: #{tpu_custom_call.1} parent=5 // pred_check_branch
        %334 = sbr.rel (%p331) target = $region12
      $region11: #{tpu_custom_call.1} parent=5 // pred_region
        %s335 = ssub.s32 %s29, 1
        // Predicated region
        $region13: #{tpu_custom_call.1} parent=11 // pred_check
          %p336 = pneg %p90
        $region14: #{tpu_custom_call.1} parent=11 // pred_check_branch
          %338 = sbr.rel (%p336) target = $region16
        $region15: #{tpu_custom_call.1} parent=11 // pred_region
          _
        $region16: #{tpu_custom_call.1} parent=11 // pred_fallthru
          _
        // Predicated region
        $region17: #{tpu_custom_call.1} parent=11 // pred_check
          %p339 = pneg %p111
        $region18: #{tpu_custom_call.1} parent=11 // pred_check_branch
          %341 = sbr.rel (%p339) target = $region20
        $region19: #{tpu_custom_call.1} parent=11 // pred_region
          _
        $region20: #{tpu_custom_call.1} parent=11 // pred_fallthru
          _
        // Predicated region
        $region21: #{tpu_custom_call.1} parent=11 // pred_check
          %p342 = pneg %p132
        $region22: #{tpu_custom_call.1} parent=11 // pred_check_branch
          %344 = sbr.rel (%p342) target = $region24
        $region23: #{tpu_custom_call.1} parent=11 // pred_region
          %s346 = ssub.s32 512, 512
          %347 = vsyncadd [#allocation6], %s346
          %s348 = sshll.u32 [#allocation5], 4
          %s349 = int_to_ptr.vmem [resolvable:$true] %s348
          %354 = dma.hbm_to_vmem [thread:$0]  %s3, 512, %s349, [#allocation6], 128, 128, 8
        $region24: #{tpu_custom_call.1} parent=11 // pred_fallthru
          _
        // Predicated region
        $region25: #{tpu_custom_call.1} parent=11 // pred_check
          %p355 = pneg %p153
        $region26: #{tpu_custom_call.1} parent=11 // pred_check_branch
          %357 = sbr.rel (%p355) target = $region28
        $region27: #{tpu_custom_call.1} parent=11 // pred_region
          _
        $region28: #{tpu_custom_call.1} parent=11 // pred_fallthru
          _
        // Predicated region
        $region29: #{tpu_custom_call.1} parent=11 // pred_check
          %p358 = pneg %p174
        $region30: #{tpu_custom_call.1} parent=11 // pred_check_branch
          %360 = sbr.rel (%p358) target = $region32
        $region31: #{tpu_custom_call.1} parent=11 // pred_region
          %s362 = ssub.s32 512, 512
          %363 = vsyncadd [#allocation6], %s362
          %s364 = sshll.u32 [#allocation7], 4
          %s365 = int_to_ptr.vmem [resolvable:$true] %s364
          %370 = dma.hbm_to_vmem [thread:$0]  %s5, 512, %s365, [#allocation6], 128, 128, 8
        $region32: #{tpu_custom_call.1} parent=11 // pred_fallthru
          _
        // Predicated region
        $region33: #{tpu_custom_call.1} parent=11 // pred_check
          %p371 = pneg %p195
        $region34: #{tpu_custom_call.1} parent=11 // pred_check_branch
          %373 = sbr.rel (%p371) target = $region36
        $region35: #{tpu_custom_call.1} parent=11 // pred_region
          _
        $region36: #{tpu_custom_call.1} parent=11 // pred_fallthru
          _
        // Predicated region
        $region37: #{tpu_custom_call.1} parent=11 // pred_check
          %p374 = pneg %p216
        $region38: #{tpu_custom_call.1} parent=11 // pred_check_branch
          %376 = sbr.rel (%p374) target = $region40
        $region39: #{tpu_custom_call.1} parent=11 // pred_region
          %s378 = ssub.s32 512, 512
          %379 = vsyncadd [#allocation9], %s378
          %s380 = sshll.u32 [#allocation8], 4
          %s381 = int_to_ptr.vmem [resolvable:$true] %s380
          %386 = dma.hbm_to_vmem [thread:$0]  %s7, 512, %s381, [#allocation9], 128, 128, 8
        $region40: #{tpu_custom_call.1} parent=11 // pred_fallthru
          _
        // Predicated region
        $region41: #{tpu_custom_call.1} parent=11 // pred_check
          %p387 = pneg %p237
        $region42: #{tpu_custom_call.1} parent=11 // pred_check_branch
          %389 = sbr.rel (%p387) target = $region44
        $region43: #{tpu_custom_call.1} parent=11 // pred_region
          _
        $region44: #{tpu_custom_call.1} parent=11 // pred_fallthru
          _
      $region12: #{tpu_custom_call.1} parent=5 // pred_fallthru
        _
      %p390 = scmp.lt.s32.totalorder %s29, 2
      // Predicated region
      $region45: #{tpu_custom_call.1} parent=5 // pred_check
        %p391 = pneg %p390
      $region46: #{tpu_custom_call.1} parent=5 // pred_check_branch
        %393 = sbr.rel (%p391) target = $region48
      $region47: #{tpu_custom_call.1} parent=5 // pred_region
        // Predicated region
        $region49: #{tpu_custom_call.1} parent=47 // pred_check
          %p394 = pneg %p63
        $region50: #{tpu_custom_call.1} parent=47 // pred_check_branch
          %396 = sbr.rel (%p394) target = $region52
        $region51: #{tpu_custom_call.1} parent=47 // pred_region
          %s397 = sand.u32 %s53, 1
          %s398 = scalar_lea.sflag [#allocation3], %s397
          %s399 = sand.u32 %s53, 1
          %s400 = smul.addr %s399, 8
          %s401 = scalar_lea.vmem [#allocation2], %s400
          %s403 = ssub.s32 128, 128
          %404 = vsyncadd %s398, %s403
          %s405 = sadd.s32 %s37, %s36
          %s406 = smul.addr %s405, 128
          %s407 = scalar_lea.hbm %s0, %s406
          %s409 = sshll.u32 %s401, 4
          %s410 = int_to_ptr.vmem [resolvable:$true] %s409
          %412 = dma.hbm_to_vmem [thread:$0]  %s407, 128, %s410, %s398
        $region52: #{tpu_custom_call.1} parent=47 // pred_fallthru
          _
      $region48: #{tpu_custom_call.1} parent=5 // pred_fallthru
        _
      %p413 = scmp.le.s32.totalorder 1, %s29
      %p414 = scmp.lt.s32.totalorder %s29, 3
      %p415 = pnand %p413, %p414
      %p416 = pneg %p415
      // Predicated region
      $region53: #{tpu_custom_call.1} parent=5 // pred_check
        _
      $region54: #{tpu_custom_call.1} parent=5 // pred_check_branch
        %418 = sbr.rel (%p415) target = $region56
      $region55: #{tpu_custom_call.1} parent=5 // pred_region
        %s419 = ssub.s32 %s29, 1
        %s420 = sand.u32 %s56, 1
        %s421 = scalar_lea.sflag [#allocation3], %s420
        %s422 = sand.u32 %s56, 1
        %s423 = smul.addr %s422, 8
        %s424 = scalar_lea.vmem [#allocation2], %s423
        // Predicated region
        $region57: #{tpu_custom_call.1} parent=55 // pred_check
          %p425 = pneg %p69
        $region58: #{tpu_custom_call.1} parent=55 // pred_check_branch
          %427 = sbr.rel (%p425) target = $region60
        $region59: #{tpu_custom_call.1} parent=55 // pred_region
          %428 = dma.done %s421, 128
        $region60: #{tpu_custom_call.1} parent=55 // pred_fallthru
          _
        // Predicated region
        $region61: #{tpu_custom_call.1} parent=55 // pred_check
          %p429 = pneg %p132
        $region62: #{tpu_custom_call.1} parent=55 // pred_check_branch
          %431 = sbr.rel (%p429) target = $region64
        $region63: #{tpu_custom_call.1} parent=55 // pred_region
          %432 = dma.done [#allocation6], 512
        $region64: #{tpu_custom_call.1} parent=55 // pred_fallthru
          _
        // Predicated region
        $region65: #{tpu_custom_call.1} parent=55 // pred_check
          %p433 = pneg %p174
        $region66: #{tpu_custom_call.1} parent=55 // pred_check_branch
          %435 = sbr.rel (%p433) target = $region68
        $region67: #{tpu_custom_call.1} parent=55 // pred_region
          %436 = dma.done [#allocation6], 512
        $region68: #{tpu_custom_call.1} parent=55 // pred_fallthru
          _
        // Predicated region
        $region69: #{tpu_custom_call.1} parent=55 // pred_check
          %p437 = pneg %p216
        $region70: #{tpu_custom_call.1} parent=55 // pred_check_branch
          %439 = sbr.rel (%p437) target = $region72
        $region71: #{tpu_custom_call.1} parent=55 // pred_region
          %440 = dma.done [#allocation9], 512
        $region72: #{tpu_custom_call.1} parent=55 // pred_fallthru
          _
        %s441 = sand.u32 %s56, 1
        %s442 = scalar_lea.sflag [#allocation3], %s441
        %s443 = sand.u32 %s56, 1
        %s444 = smul.addr %s443, 8
        %s445 = scalar_lea.vmem [#allocation2], %s444
        %p446 = pneg %p69
        %p447 = pneg %p66
        %p448 = pneg %p90
        %p449 = pneg %p87
        %p450 = pneg %p111
        %p451 = pneg %p108
        %p452 = pneg %p132
        %p453 = pneg %p129
        %p454 = pneg %p153
        %p455 = pneg %p150
        %p456 = pneg %p174
        %p457 = pneg %p171
        %p458 = pneg %p195
        %p459 = pneg %p192
        %p460 = pneg %p216
        %p461 = pneg %p213
        %p462 = pneg %p237
        %p463 = pneg %p234
        %p464 = pneg %p265
        %p465 = pneg %p262
        %s466 = sand.u32 %s252, 1
        %s467 = scalar_lea.sflag [#allocation4], %s466
        %s468 = sand.u32 %s252, 1
        %s469 = smul.addr %s468, 8
        %s470 = scalar_lea.vmem [#allocation10], %s469
        %p471 = pneg %p293
        %p472 = pneg %p290
        %s473 = sand.u32 %s34, 1
        %s474 = scalar_lea.sflag [#allocation12], %s473
        %s475 = sand.u32 %s280, 1
        %s476 = smul.addr %s475, 8
        %s477 = scalar_lea.vmem [#allocation11], %s476
        %p478 = pneg %p321
        %p479 = pneg %p318
        %s480 = sand.u32 %s34, 1
        %s481 = scalar_lea.sflag [#allocation12], %s480
        %s482 = sand.u32 %s308, 1
        %s483 = smul.addr %s482, 8
        %s484 = scalar_lea.vmem [#allocation13], %s483
        %v485 = vld [vmem:[%s424] sm:$0xff]
        %vm486 = vcmask 261120
        %v487 = vsel %vm486, %v485, 0.0
        %488 = vadd.xlane.f32.xlu0 %v487
        %v489 = vpop.xlane.xlu0 %488
        %v490 = vrcp.pop 32.0
        %v491 = vmul.f32 %v489, %v490
        %v492 = vsub.f32 %v485, %v491
        %v493 = vmul.f32 %v492, %v492
        %v494 = vsel %vm486, %v493, 0.0
        %495 = vadd.xlane.f32.xlu0 %v494
        %v496 = vpop.xlane.xlu0 %495
        %v497 = vmul.f32 %v496, %v490
        %v498 = vadd.f32 %v497, 1e-05
        %v499 = vrsqrt.pop %v498
        %v500 = vmul.f32 %v492, %v499
        %v501 = vld [vmem:[%s1] sm:$0x1]
        %v503 = vlaneseq
        %v504 = vshrl.u32 %v503, 7
        %v505 = vsub.s32 0, %v504
        %v506 = vrot.slane %v501, %v505
        %v508 = vmul.f32 %v500, %v506
        %v509 = vld [vmem:[%s2] sm:$0x1]
        %v511 = vlaneseq
        %v512 = vshrl.u32 %v511, 7
        %v513 = vsub.s32 0, %v512
        %v514 = vrot.slane %v509, %v513
        %v516 = vadd.f32 %v508, %v514
        %v517 = vld [vmem:[#allocation5] sm:$0xff]
        %v518 = vld [vmem:[#allocation5 + $0x8] sm:$0xff]
        %v519 = vld [vmem:[#allocation5 + $0x10] sm:$0xff]
        %v520 = vld [vmem:[#allocation5 + $0x18] sm:$0xff]
        %v521 = vld [vmem:[%s4] sm:$0x1]
        %v523 = vlaneseq
        %v524 = vshrl.u32 %v523, 7
        %v525 = vsub.s32 0, %v524
        %v526 = vrot.slane %v521, %v525
        %v529 = vsel %vm486, %v516, 0
        %531 = vmatprep.subr.mxu0 0.0
        %532 = vmatpush1.msra.mxu0 %v517
        %533 = vmatprep.subr.mxu0 0.0
        %534 = vmatpush1.msra.mxu0 %v518
        %535 = vmatprep.subr.mxu0 0.0
        %536 = vmatpush1.msra.mxu0 %v519
        %537 = vmatprep.subr.mxu0 0.0
        %538 = vmatpush1.msra.mxu0 %v520
        %539 = vmatprep.subr.mxu0 0.0
        %540 = vmatpush1.msra.mxu0 0.0
        %541 = vmatprep.subr.mxu0 0.0
        %542 = vmatpush1.msra.mxu0 0.0
        %543 = vmatprep.subr.mxu0 0.0
        %544 = vmatpush1.msra.mxu0 0.0
        %545 = vmatprep.subr.mxu0 0.0
        %546 = vmatpush1.msra.mxu0 0.0
        %547 = vmatprep.subr.mxu0 0.0
        %548 = vmatpush1.msra.mxu0 0.0
        %549 = vmatprep.subr.mxu0 0.0
        %550 = vmatpush1.msra.mxu0 0.0
        %551 = vmatprep.subr.mxu0 0.0
        %552 = vmatpush1.msra.mxu0 0.0
        %553 = vmatprep.subr.mxu0 0.0
        %554 = vmatpush1.msra.mxu0 0.0
        %555 = vmatprep.subr.mxu0 0.0
        %556 = vmatpush1.msra.mxu0 0.0
        %557 = vmatprep.subr.mxu0 0.0
        %558 = vmatpush1.msra.mxu0 0.0
        %559 = vmatprep.subr.mxu0 0.0
        %560 = vmatpush1.msra.mxu0 0.0
        %561 = vmatprep.subr.mxu0 0.0
        %562 = vmatpush1.msra.mxu0 0.0
        %563 = vmatprep.subr.mxu0 0.0
        %564 = vmatpush1.msra.mxu0 0.0
        %565 = vmatprep.subr.mxu0 0.0
        %566 = vmatpush1.msra.mxu0 0.0
        %567 = vmatprep.subr.mxu0 0.0
        %568 = vmatpush1.msra.mxu0 0.0
        %569 = vmatprep.subr.mxu0 0.0
        %570 = vmatpush1.msra.mxu0 0.0
        %571 = vmatprep.subr.mxu0 0.0
        %572 = vmatpush1.msra.mxu0 0.0
        %573 = vmatprep.subr.mxu0 0.0
        %574 = vmatpush1.msra.mxu0 0.0
        %575 = vmatprep.subr.mxu0 0.0
        %576 = vmatpush1.msra.mxu0 0.0
        %577 = vmatprep.subr.mxu0 0.0
        %578 = vmatpush1.msra.mxu0 0.0
        %579 = vmatprep.subr.mxu0 0.0
        %580 = vmatpush1.msra.mxu0 0.0
        %581 = vmatprep.subr.mxu0 0.0
        %582 = vmatpush1.msra.mxu0 0.0
        %583 = vmatprep.subr.mxu0 0.0
        %584 = vmatpush1.msra.mxu0 0.0
        %585 = vmatprep.subr.mxu0 0.0
        %586 = vmatpush1.msra.mxu0 0.0
        %587 = vmatprep.subr.mxu0 0.0
        %588 = vmatpush1.msra.mxu0 0.0
        %589 = vmatprep.subr.mxu0 0.0
        %590 = vmatpush1.msra.mxu0 0.0
        %591 = vmatprep.subr.mxu0 0.0
        %592 = vmatpush1.msra.mxu0 0.0
        %593 = vmatprep.subr.mxu0 0.0
        %594 = vmatpush1.msra.mxu0 0.0
        %595 = vmatprep.mubr.f32.mxu0 0.0
        %596 = vmatmul.mubr.f32.gmra.mrb[0].mxu0 %v529
        %v597 = vpop.f32.mrb[0].mxu0
        %v598 = vadd.f32 %v526, %v597
        %v599 = vpop.f32.mrb[0].mxu0
        %600 = vdwg.mxu0
        %601 = vst.msk [vmem:[%s470] sm:$0xff] %vm486, %v598
        %v602 = vld [vmem:[#allocation7] sm:$0xff]
        %v603 = vld [vmem:[#allocation7 + $0x8] sm:$0xff]
        %v604 = vld [vmem:[#allocation7 + $0x10] sm:$0xff]
        %v605 = vld [vmem:[#allocation7 + $0x18] sm:$0xff]
        %v606 = vld [vmem:[%s6] sm:$0x1]
        %v608 = vlaneseq
        %v609 = vshrl.u32 %v608, 7
        %v610 = vsub.s32 0, %v609
        %v611 = vrot.slane %v606, %v610
        %613 = vmatprep.subr.mxu0 0.0
        %614 = vmatpush1.msra.mxu0 %v602
        %615 = vmatprep.subr.mxu0 0.0
        %616 = vmatpush1.msra.mxu0 %v603
        %617 = vmatprep.subr.mxu0 0.0
        %618 = vmatpush1.msra.mxu0 %v604
        %619 = vmatprep.subr.mxu0 0.0
        %620 = vmatpush1.msra.mxu0 %v605
        %621 = vmatprep.subr.mxu0 0.0
        %622 = vmatpush1.msra.mxu0 0.0
        %623 = vmatprep.subr.mxu0 0.0
        %624 = vmatpush1.msra.mxu0 0.0
        %625 = vmatprep.subr.mxu0 0.0
        %626 = vmatpush1.msra.mxu0 0.0
        %627 = vmatprep.subr.mxu0 0.0
        %628 = vmatpush1.msra.mxu0 0.0
        %629 = vmatprep.subr.mxu0 0.0
        %630 = vmatpush1.msra.mxu0 0.0
        %631 = vmatprep.subr.mxu0 0.0
        %632 = vmatpush1.msra.mxu0 0.0
        %633 = vmatprep.subr.mxu0 0.0
        %634 = vmatpush1.msra.mxu0 0.0
        %635 = vmatprep.subr.mxu0 0.0
        %636 = vmatpush1.msra.mxu0 0.0
        %637 = vmatprep.subr.mxu0 0.0
        %638 = vmatpush1.msra.mxu0 0.0
        %639 = vmatprep.subr.mxu0 0.0
        %640 = vmatpush1.msra.mxu0 0.0
        %641 = vmatprep.subr.mxu0 0.0
        %642 = vmatpush1.msra.mxu0 0.0
        %643 = vmatprep.subr.mxu0 0.0
        %644 = vmatpush1.msra.mxu0 0.0
        %645 = vmatprep.subr.mxu0 0.0
        %646 = vmatpush1.msra.mxu0 0.0
        %647 = vmatprep.subr.mxu0 0.0
        %648 = vmatpush1.msra.mxu0 0.0
        %649 = vmatprep.subr.mxu0 0.0
        %650 = vmatpush1.msra.mxu0 0.0
        %651 = vmatprep.subr.mxu0 0.0
        %652 = vmatpush1.msra.mxu0 0.0
        %653 = vmatprep.subr.mxu0 0.0
        %654 = vmatpush1.msra.mxu0 0.0
        %655 = vmatprep.subr.mxu0 0.0
        %656 = vmatpush1.msra.mxu0 0.0
        %657 = vmatprep.subr.mxu0 0.0
        %658 = vmatpush1.msra.mxu0 0.0
        %659 = vmatprep.subr.mxu0 0.0
        %660 = vmatpush1.msra.mxu0 0.0
        %661 = vmatprep.subr.mxu0 0.0
        %662 = vmatpush1.msra.mxu0 0.0
        %663 = vmatprep.subr.mxu0 0.0
        %664 = vmatpush1.msra.mxu0 0.0
        %665 = vmatprep.subr.mxu0 0.0
        %666 = vmatpush1.msra.mxu0 0.0
        %667 = vmatprep.subr.mxu0 0.0
        %668 = vmatpush1.msra.mxu0 0.0
        %669 = vmatprep.subr.mxu0 0.0
        %670 = vmatpush1.msra.mxu0 0.0
        %671 = vmatprep.subr.mxu0 0.0
        %672 = vmatpush1.msra.mxu0 0.0
        %673 = vmatprep.subr.mxu0 0.0
        %674 = vmatpush1.msra.mxu0 0.0
        %675 = vmatprep.subr.mxu0 0.0
        %676 = vmatpush1.msra.mxu0 0.0
        %677 = vmatprep.mubr.f32.mxu0 0.0
        %678 = vmatmul.mubr.f32.gmra.mrb[0].mxu0 %v529
        %v679 = vpop.f32.mrb[0].mxu0
        %v680 = vadd.f32 %v611, %v679
        %v681 = vpop.f32.mrb[0].mxu0
        %682 = vdwg.mxu0
        %683 = vst.msk [vmem:[%s477] sm:$0xff] %vm486, %v680
        %v684 = vld [vmem:[#allocation8] sm:$0xff]
        %v685 = vld [vmem:[#allocation8 + $0x8] sm:$0xff]
        %v686 = vld [vmem:[#allocation8 + $0x10] sm:$0xff]
        %v687 = vld [vmem:[#allocation8 + $0x18] sm:$0xff]
        %v688 = vld [vmem:[%s8] sm:$0x1]
        %v690 = vlaneseq
        %v691 = vshrl.u32 %v690, 7
        %v692 = vsub.s32 0, %v691
        %v693 = vrot.slane %v688, %v692
        %695 = vmatprep.subr.mxu0 0.0
        %696 = vmatpush1.msra.mxu0 %v684
        %697 = vmatprep.subr.mxu0 0.0
        %698 = vmatpush1.msra.mxu0 %v685
        %699 = vmatprep.subr.mxu0 0.0
        %700 = vmatpush1.msra.mxu0 %v686
        %701 = vmatprep.subr.mxu0 0.0
        %702 = vmatpush1.msra.mxu0 %v687
        %703 = vmatprep.subr.mxu0 0.0
        %704 = vmatpush1.msra.mxu0 0.0
        %705 = vmatprep.subr.mxu0 0.0
        %706 = vmatpush1.msra.mxu0 0.0
        %707 = vmatprep.subr.mxu0 0.0
        %708 = vmatpush1.msra.mxu0 0.0
        %709 = vmatprep.subr.mxu0 0.0
        %710 = vmatpush1.msra.mxu0 0.0
        %711 = vmatprep.subr.mxu0 0.0
        %712 = vmatpush1.msra.mxu0 0.0
        %713 = vmatprep.subr.mxu0 0.0
        %714 = vmatpush1.msra.mxu0 0.0
        %715 = vmatprep.subr.mxu0 0.0
        %716 = vmatpush1.msra.mxu0 0.0
        %717 = vmatprep.subr.mxu0 0.0
        %718 = vmatpush1.msra.mxu0 0.0
        %719 = vmatprep.subr.mxu0 0.0
        %720 = vmatpush1.msra.mxu0 0.0
        %721 = vmatprep.subr.mxu0 0.0
        %722 = vmatpush1.msra.mxu0 0.0
        %723 = vmatprep.subr.mxu0 0.0
        %724 = vmatpush1.msra.mxu0 0.0
        %725 = vmatprep.subr.mxu0 0.0
        %726 = vmatpush1.msra.mxu0 0.0
        %727 = vmatprep.subr.mxu0 0.0
        %728 = vmatpush1.msra.mxu0 0.0
        %729 = vmatprep.subr.mxu0 0.0
        %730 = vmatpush1.msra.mxu0 0.0
        %731 = vmatprep.subr.mxu0 0.0
        %732 = vmatpush1.msra.mxu0 0.0
        %733 = vmatprep.subr.mxu0 0.0
        %734 = vmatpush1.msra.mxu0 0.0
        %735 = vmatprep.subr.mxu0 0.0
        %736 = vmatpush1.msra.mxu0 0.0
        %737 = vmatprep.subr.mxu0 0.0
        %738 = vmatpush1.msra.mxu0 0.0
        %739 = vmatprep.subr.mxu0 0.0
        %740 = vmatpush1.msra.mxu0 0.0
        %741 = vmatprep.subr.mxu0 0.0
        %742 = vmatpush1.msra.mxu0 0.0
        %743 = vmatprep.subr.mxu0 0.0
        %744 = vmatpush1.msra.mxu0 0.0
        %745 = vmatprep.subr.mxu0 0.0
        %746 = vmatpush1.msra.mxu0 0.0
        %747 = vmatprep.subr.mxu0 0.0
        %748 = vmatpush1.msra.mxu0 0.0
        %749 = vmatprep.subr.mxu0 0.0
        %750 = vmatpush1.msra.mxu0 0.0
        %751 = vmatprep.subr.mxu0 0.0
        %752 = vmatpush1.msra.mxu0 0.0
        %753 = vmatprep.subr.mxu0 0.0
        %754 = vmatpush1.msra.mxu0 0.0
        %755 = vmatprep.subr.mxu0 0.0
        %756 = vmatpush1.msra.mxu0 0.0
        %757 = vmatprep.subr.mxu0 0.0
        %758 = vmatpush1.msra.mxu0 0.0
        %759 = vmatprep.mubr.f32.mxu0 0.0
        %760 = vmatmul.mubr.f32.gmra.mrb[0].mxu0 %v529
        %v761 = vpop.f32.mrb[0].mxu0
        %v762 = vadd.f32 %v693, %v761
        %v763 = vpop.f32.mrb[0].mxu0
        %764 = vdwg.mxu0
        %765 = vst.msk [vmem:[%s484] sm:$0xff] %vm486, %v762
        %s766 = sand.u32 %s252, 1
        %s767 = scalar_lea.sflag [#allocation4], %s766
        %s768 = sand.u32 %s252, 1
        %s769 = smul.addr %s768, 8
        %s770 = scalar_lea.vmem [#allocation10], %s769
        %s771 = sand.u32 %s34, 1
        %s772 = scalar_lea.sflag [#allocation12], %s771
        %s773 = sand.u32 %s280, 1
        %s774 = smul.addr %s773, 8
        %s775 = scalar_lea.vmem [#allocation11], %s774
        %s776 = sand.u32 %s34, 1
        %s777 = scalar_lea.sflag [#allocation12], %s776
        %s778 = sand.u32 %s308, 1
        %s779 = smul.addr %s778, 8
        %s780 = scalar_lea.vmem [#allocation13], %s779
        // Predicated region
        $region73: #{tpu_custom_call.1} parent=55 // pred_check
          %p781 = pneg %p262
        $region74: #{tpu_custom_call.1} parent=55 // pred_check_branch
          %783 = sbr.rel (%p781) target = $region76
        $region75: #{tpu_custom_call.1} parent=55 // pred_region
          %s785 = ssub.s32 128, 128
          %786 = vsyncadd %s767, %s785
          %s787 = sadd.s32 %s39, %s38
          %s788 = smul.addr %s787, 128
          %s789 = scalar_lea.hbm %s9, %s788
          %s791 = sshll.u32 %s770, 4
          %s792 = int_to_ptr.vmem [resolvable:$true] %s791
          %794 = dma.vmem_to_hbm [thread:$0]  %s792, 128, %s789, %s767
        $region76: #{tpu_custom_call.1} parent=55 // pred_fallthru
          _
        // Predicated region
        $region77: #{tpu_custom_call.1} parent=55 // pred_check
          %p795 = pneg %p290
        $region78: #{tpu_custom_call.1} parent=55 // pred_check_branch
          %797 = sbr.rel (%p795) target = $region80
        $region79: #{tpu_custom_call.1} parent=55 // pred_region
          %s799 = ssub.s32 128, 128
          %800 = vsyncadd %s772, %s799
          %s801 = sadd.s32 %s39, %s38
          %s802 = smul.addr %s801, 128
          %s803 = scalar_lea.hbm %s10, %s802
          %s805 = sshll.u32 %s775, 4
          %s806 = int_to_ptr.vmem [resolvable:$true] %s805
          %808 = dma.vmem_to_hbm [thread:$0]  %s806, 128, %s803, %s772
        $region80: #{tpu_custom_call.1} parent=55 // pred_fallthru
          _
        // Predicated region
        $region81: #{tpu_custom_call.1} parent=55 // pred_check
          %p809 = pneg %p318
        $region82: #{tpu_custom_call.1} parent=55 // pred_check_branch
          %811 = sbr.rel (%p809) target = $region84
        $region83: #{tpu_custom_call.1} parent=55 // pred_region
          %s813 = ssub.s32 128, 128
          %814 = vsyncadd %s777, %s813
          %s815 = sadd.s32 %s39, %s38
          %s816 = smul.addr %s815, 128
          %s817 = scalar_lea.hbm %s11, %s816
          %s819 = sshll.u32 %s780, 4
          %s820 = int_to_ptr.vmem [resolvable:$true] %s819
          %822 = dma.vmem_to_hbm [thread:$0]  %s820, 128, %s817, %s777
        $region84: #{tpu_custom_call.1} parent=55 // pred_fallthru
          _
      $region56: #{tpu_custom_call.1} parent=5 // pred_fallthru
        _
      %p823 = scmp.le.s32.totalorder 2, %s29
      // Predicated region
      $region85: #{tpu_custom_call.1} parent=5 // pred_check
        %p824 = pneg %p823
      $region86: #{tpu_custom_call.1} parent=5 // pred_check_branch
        %826 = sbr.rel (%p824) target = $region88
      $region87: #{tpu_custom_call.1} parent=5 // pred_region
        %s827 = ssub.s32 %s29, 2
        // Predicated region
        $region89: #{tpu_custom_call.1} parent=87 // pred_check
          %p828 = pneg %p268
        $region90: #{tpu_custom_call.1} parent=87 // pred_check_branch
          %830 = sbr.rel (%p828) target = $region92
        $region91: #{tpu_custom_call.1} parent=87 // pred_region
          %s831 = sand.u32 %s253, 1
          %s832 = scalar_lea.sflag [#allocation4], %s831
          %s833 = sand.u32 %s253, 1
          %s834 = smul.addr %s833, 8
          %s835 = scalar_lea.vmem [#allocation10], %s834
          %836 = dma.done %s832, 128
        $region92: #{tpu_custom_call.1} parent=87 // pred_fallthru
          _
        // Predicated region
        $region93: #{tpu_custom_call.1} parent=87 // pred_check
          %p837 = pneg %p296
        $region94: #{tpu_custom_call.1} parent=87 // pred_check_branch
          %839 = sbr.rel (%p837) target = $region96
        $region95: #{tpu_custom_call.1} parent=87 // pred_region
          %s840 = sand.u32 %s35, 1
          %s841 = scalar_lea.sflag [#allocation12], %s840
          %s842 = sand.u32 %s281, 1
          %s843 = smul.addr %s842, 8
          %s844 = scalar_lea.vmem [#allocation11], %s843
          %845 = dma.done %s841, 128
        $region96: #{tpu_custom_call.1} parent=87 // pred_fallthru
          _
        // Predicated region
        $region97: #{tpu_custom_call.1} parent=87 // pred_check
          %p846 = pneg %p324
        $region98: #{tpu_custom_call.1} parent=87 // pred_check_branch
          %848 = sbr.rel (%p846) target = $region100
        $region99: #{tpu_custom_call.1} parent=87 // pred_region
          %s849 = sand.u32 %s35, 1
          %s850 = scalar_lea.sflag [#allocation12], %s849
          %s851 = sand.u32 %s309, 1
          %s852 = smul.addr %s851, 8
          %s853 = scalar_lea.vmem [#allocation13], %s852
          %854 = dma.done %s850, 128
        $region100: #{tpu_custom_call.1} parent=87 // pred_fallthru
          _
      $region88: #{tpu_custom_call.1} parent=5 // pred_fallthru
        _
    $region6: #{tpu_custom_call.1} parent=1 // loop_footer
      %s33 = sadd.s32 1, %s29
    $region7: #{tpu_custom_call.1} parent=1 // loop_footer_branch
      %28 = sbr.rel target = $region3
    $region8: #{tpu_custom_call.1} parent=1 // loop_exit
      _
    %855 = vsyncpa [#allocation3], 1
    %s856 = scalar_lea.sflag [#allocation3], 1
    %857 = vsyncpa %s856, 1
    %858 = vsyncpa [#allocation6], 1
    %859 = vsyncpa [#allocation9], 1
    %860 = vsyncpa [#allocation4], 1
    %s861 = scalar_lea.sflag [#allocation4], 1
    %862 = vsyncpa %s861, 1
    %863 = vsyncpa [#allocation12], 1
    %s864 = scalar_lea.sflag [#allocation12], 1
    %865 = vsyncpa %s864, 1

</llo_original>
